<compile_context>
chip_gen: v7x
topology: tpu7x:2x2x1
jax: 0.10.0
libtpu: 0.0.40
codegen_flags: <defaults>
</compile_context>

<pallas_src>
import functools

import jax
import jax.numpy as jnp
from jax.experimental import pallas as pl
from jax.experimental.pallas import tpu as pltpu

LANE = 128
SUB = 8                              # f32 sublanes per vreg (accumulator layout)
MAX_BLOCK_BYTES = 4 * 1024 * 1024    # 4 MiB/block -> 8 MiB double-buffered input


def _sumsq_kernel(x_ref, out_ref, *, rows, block_rows, bpc, chunks, need_mask):
    """Accumulate sum(x^2) for one (batch, chunk) into a lane-dense (1,8,128) block."""
    i = pl.program_id(0)             # batch * chunks   (parallel)
    j = pl.program_id(1)             # row-block within chunk (reduction axis)

    @pl.when(j == 0)
    def _():
        out_ref[...] = jnp.zeros_like(out_ref)

    x = x_ref[...].astype(jnp.float32)            # (1, block_rows, LANE)
    sq = x * x

    def accumulate(vals):
        # Reduce only over whole (8,128)-vreg groups: pure VPU adds, cross-lane
        # reduction is deferred to the tiny XLA epilogue.
        out_ref[...] += (
            vals.reshape(block_rows // SUB, SUB, LANE).sum(axis=0).reshape(1, SUB, LANE)
        )

    if not need_mask:
        accumulate(sq)
    else:
        nb = bpc * chunks
        valid = rows - (nb - 1) * block_rows      # static: valid rows in ragged last block
        if chunks > 1:
            is_last = jnp.logical_and(j == bpc - 1, (i % chunks) == chunks - 1)
        else:
            is_last = j == bpc - 1

        @pl.when(jnp.logical_not(is_last))
        def _():
            accumulate(sq)                         # interior blocks: no mask cost

        @pl.when(is_last)
        def _():
            row_ids = jax.lax.broadcasted_iota(jnp.int32, sq.shape, 1)
            accumulate(jnp.where(row_ids < valid, sq, 0.0))


def _per_batch_sumsq(g, *, max_block_rows=None):
    """g: (B, N) in native dtype -> (B,) float32 sum of squares per sample."""
    bsz, n = g.shape
    itemsize = jnp.dtype(g.dtype).itemsize
    subtile = max(SUB, SUB * (4 // itemsize))      # 8 (f32), 16 (bf16), 32 (int8/fp8)

    # Common case (CNN feature maps): N is a multiple of 128 -> zero-copy reshape.
    pad = (-n) % LANE
    if pad:
        # TODO(synk): this pads (<=127 elems/sample, zeros add 0 to the sumsq) but
        # materializes one extra HBM copy; avoiding it entirely for non-128-multiple
        # feature sizes would need a manual-DMA (pl.ANY) kernel.
        g = jnp.pad(g, ((0, 0), (0, pad)))
    rows = (n + pad) // LANE
    g3 = g.reshape(bsz, rows, LANE)

    if max_block_rows is None:
        max_block_rows = (MAX_BLOCK_BYTES // (LANE * itemsize)) // subtile * subtile
    max_block_rows = max(subtile, (max_block_rows // subtile) * subtile)
    rows_up = pl.cdiv(rows, subtile) * subtile
    block_rows = min(max_block_rows, rows_up)      # multiple of the packed sublane tile
    nb = pl.cdiv(rows, block_rows)
    need_mask = (rows % block_rows) != 0

    # Split the row-block range across 2 parallel "chunks" when the batch alone
    # can't keep both v7x TensorCores busy (bsz == 1 or odd). Harmless on 1-TC chips.
    chunks = 2 if (bsz % 2 == 1 and nb >= 2 and nb % 2 == 0) else 1
    bpc = nb // chunks

    if chunks == 1:
        in_index = lambda i, j: (i, j, 0)
    else:
        in_index = lambda i, j: (i // chunks, (i % chunks) * bpc + j, 0)

    kernel = functools.partial(
        _sumsq_kernel, rows=rows, block_rows=block_rows, bpc=bpc,
        chunks=chunks, need_mask=need_mask)

    partials = pl.pallas_call(
        kernel,
        out_shape=jax.ShapeDtypeStruct((bsz * chunks, SUB, LANE), jnp.float32),
        grid_spec=pltpu.PrefetchScalarGridSpec(
            num_scalar_prefetch=0,
            grid=(bsz * chunks, bpc),
            in_specs=[pl.BlockSpec((1, block_rows, LANE), in_index)],
            out_specs=pl.BlockSpec((1, SUB, LANE), lambda i, j: (i, 0, 0)),
        ),
        compiler_params=pltpu.CompilerParams(
            dimension_semantics=("parallel", "arbitrary"),
        ),
        cost_estimate=pl.CostEstimate(
            flops=2 * bsz * rows * LANE,
            transcendentals=0,
            bytes_accessed=bsz * rows * LANE * itemsize + bsz * chunks * SUB * LANE * 4,
        ),
    )(g3)

    # Tiny epilogue reduction (B x chunks x 8 x 128) done in XLA.
    return jnp.sum(partials.reshape(bsz, chunks * SUB * LANE), axis=1)


def gradient_penalty_loss(grad_interp, *, max_block_rows=None):
    """Penalty on a gradient tensor: mean_b((||grad_b||_2 - 1)^2)."""
    bsz = grad_interp.shape[0]
    g = grad_interp.reshape(bsz, -1)               # native dtype, free reshape
    sumsq = _per_batch_sumsq(g, max_block_rows=max_block_rows)
    norm = jnp.sqrt(sumsq)
    return jnp.mean((norm - 1.0) ** 2)


def gradient_penalty_from_critic(critic_fn, interp):
    """Equivalent of GradientPenaltyLoss.forward(interp, interp_crit) with
    interp_crit = critic_fn(interp). grad_outputs = ones  <=>  VJP with a ones
    cotangent; the result stays differentiable (create_graph=True analogue)."""
    # TODO(synk): torch.autograd.grad on an opaque graph has no Pallas equivalent;
    # the gradient is produced by jax.vjp of an explicit critic_fn, and only the
    # penalty reduction on that gradient runs as a Pallas kernel.
    interp_crit, vjp_fn = jax.vjp(critic_fn, interp)
    (grad_interp,) = vjp_fn(jnp.ones_like(interp_crit))
    return gradient_penalty_loss(grad_interp)


def _gradient_penalty_loss_ref(grad_interp):
    g = grad_interp.reshape(grad_interp.shape[0], -1).astype(jnp.float32)
    norm = jnp.sqrt(jnp.sum(g * g, axis=1))
    return jnp.mean((norm - 1.0) ** 2)


if __name__ == "__main__":
    key = jax.random.PRNGKey(0)
    k1, k2, k3, k4, k5 = jax.random.split(key, 5)

    # Full forward-equivalent path (autograd via jax.vjp + Pallas penalty).
    B, C, H, W = 2, 4, 16, 16
    interp = jax.random.normal(k1, (B, C, H, W), dtype=jnp.float32)
    w = jax.random.normal(k2, (B, C, H, W), dtype=jnp.float32)

    def critic_fn(x):
        # Simple deterministic differentiable stand-in critic: per-sample score.
        return jnp.sum(w * x * x, axis=(1, 2, 3))

    loss = jax.block_until_ready(gradient_penalty_from_critic(critic_fn, interp))
    interp_crit, vjp_fn = jax.vjp(critic_fn, interp)
    (grad_interp,) = vjp_fn(jnp.ones_like(interp_crit))
    ref = _gradient_penalty_loss_ref(grad_interp)
    assert jnp.allclose(loss, ref, rtol=1e-5, atol=1e-5), (loss, ref)

    # Direct penalty on gradient tensors, exercising the kernel variants.
    # (a) aligned f32: no pad, no mask.
    la = jax.block_until_ready(gradient_penalty_loss(grad_interp))
    assert jnp.allclose(la, ref, rtol=1e-5, atol=1e-5), (la, ref)

    # (b) ragged feature size (pad-to-128 fallback + masked last block), odd batch.
    gb = jax.random.normal(k3, (3, 5, 7, 9), dtype=jnp.float32)
    lb = jax.block_until_ready(gradient_penalty_loss(gb))
    rb = _gradient_penalty_loss_ref(gb)
    assert jnp.allclose(lb, rb, rtol=1e-5, atol=1e-5), (lb, rb)

    # (c) batch=1, several row blocks: 2-way chunked parallel grid + masked last block.
    gc = jax.random.normal(k4, (1, 250, 128), dtype=jnp.float32)
    lc = jax.block_until_ready(gradient_penalty_loss(gc, max_block_rows=64))
    rc = _gradient_penalty_loss_ref(gc)
    assert jnp.allclose(lc, rc, rtol=1e-5, atol=1e-5), (lc, rc)

    # (d) bf16 gradient: packed 16-sublane tile alignment + masked last block.
    gd = jax.random.normal(k5, (2, 3, 16, 24), dtype=jnp.float32).astype(jnp.bfloat16)
    ld = jax.block_until_ready(gradient_penalty_loss(gd))
    rd = _gradient_penalty_loss_ref(gd)
    assert jnp.allclose(ld, rd, rtol=1e-3, atol=1e-3), (ld, rd)

    print("KERNEL_OK")
</pallas_src>

<mosaic_0001>
module attributes {stable_mosaic.version = 11 : i64} {
  func.func @_sumsq_kernel(%arg0: i32, %arg1: i32, %arg2: memref<1x8x128xf32, #tpu.memory_space<vmem>>, %arg3: memref<1x8x128xf32, #tpu.memory_space<vmem>>) attributes {dimension_semantics = [#tpu.dimension_semantics<parallel>, #tpu.dimension_semantics<arbitrary>], iteration_bounds = array<i64: 2, 1>, scalar_prefetch = 0 : i64, scratch_operands = 0 : i64, tpu.core_type = #tpu.core_type<tc>, window_params = [{transform_indices = @transform_0, window_bounds = array<i64: 1, 8, 128>}, {transform_indices = @transform_1, window_bounds = array<i64: 1, 8, 128>}]} {
    %c0_i32 = arith.constant 0 : i32
    %0 = arith.cmpi eq, %arg1, %c0_i32 : i32
    %1 = arith.extui %0 : i1 to i32
    %c0_i32_0 = arith.constant 0 : i32
    %2 = arith.cmpi ne, %1, %c0_i32_0 : i32
    scf.if %2 {
      %cst_9 = arith.constant 0.000000e+00 : f32
      %10 = vector.broadcast %cst_9 : f32 to vector<1x8x128xf32>
      %c0_10 = arith.constant 0 : index
      %c0_11 = arith.constant 0 : index
      %c0_12 = arith.constant 0 : index
      %11 = vector.load %arg3[%c0_10, %c0_11, %c0_12] : memref<1x8x128xf32, #tpu.memory_space<vmem>>, vector<1x8x128xf32>
      tpu.vector_store %arg3[%c0_10, %c0_11, %c0_12], %10 {strides = array<i32>} : memref<1x8x128xf32, #tpu.memory_space<vmem>>, vector<1x8x128xf32>,
    } else {
    }
    %c0 = arith.constant 0 : index
    %c0_1 = arith.constant 0 : index
    %c0_2 = arith.constant 0 : index
    %3 = vector.load %arg2[%c0, %c0_1, %c0_2] : memref<1x8x128xf32, #tpu.memory_space<vmem>>, vector<1x8x128xf32>
    %4 = arith.mulf %3, %3 : vector<1x8x128xf32>
    %c0_3 = arith.constant 0 : index
    %c0_4 = arith.constant 0 : index
    %c0_5 = arith.constant 0 : index
    %5 = vector.load %arg3[%c0_3, %c0_4, %c0_5] : memref<1x8x128xf32, #tpu.memory_space<vmem>>, vector<1x8x128xf32>
    %cst = arith.constant dense<0.000000e+00> : vector<8x128xf32>
    %6 = vector.multi_reduction <add>, %4, %cst [0] : vector<1x8x128xf32> to vector<8x128xf32>
    %7 = vector.shape_cast %6 : vector<8x128xf32> to vector<1x8x128xf32>
    %8 = arith.addf %5, %7 : vector<1x8x128xf32>
    %c0_6 = arith.constant 0 : index
    %c0_7 = arith.constant 0 : index
    %c0_8 = arith.constant 0 : index
    %9 = vector.load %arg3[%c0_6, %c0_7, %c0_8] : memref<1x8x128xf32, #tpu.memory_space<vmem>>, vector<1x8x128xf32>
    tpu.vector_store %arg3[%c0_6, %c0_7, %c0_8], %8 {strides = array<i32>} : memref<1x8x128xf32, #tpu.memory_space<vmem>>, vector<1x8x128xf32>,
    return
  }
  func.func @transform_0(%arg0: i32, %arg1: i32) -> (i32, i32, i32) {
    %c0_i32 = arith.constant 0 : i32
    %c0_i32_0 = arith.constant 0 : i32
    return %arg0, %arg1, %c0_i32 : i32, i32, i32
  }
  func.func @transform_1(%arg0: i32, %arg1: i32) -> (i32, i32, i32) {
    %c0_i32 = arith.constant 0 : i32
    %c0_i32_0 = arith.constant 0 : i32
    %c0_i32_1 = arith.constant 0 : i32
    return %arg0, %c0_i32, %c0_i32_0 : i32, i32, i32
  }
}

</mosaic_0001>

<llo_original>
// kernel: tpu_custom_call.1
$region0: #{tpu_custom_call.1}
  #allocation0 [shape = 'u32[]', space=smem, size = 0x4, offset = 0x4, fixed_abs, tag = 'smem constant byte address 0x4 - core index']
  #allocation1 [shape = 'u32[144,128]{1,0:T(1,128)}', space=vmem, size = 0x12000, scoped, tag = 'internal scratch']
  %s0 = inlined_call_operand.hbm [shape: f32[2,8,128], index: 0, kind: input, shape index: {}]
  %s1 = inlined_call_operand.hbm [shape: f32[2,8,128], index: 1, kind: output, shape index: {}]
  %s2 = sld [smem:[#allocation0]]
  $region45: #{tpu_custom_call.1} parent=0
    _
  %s4 = ssub.s32 1, %s2
  %s5 = scalar_select 0, %s4, %s2
  $region1: #{tpu_custom_call.1} parent=0
    #allocation2 [shape = 'u8[8192]{0}', space=vmem, size = 0x2000, scoped, tag = 'input window, operand 0']
    #allocation3 [shape = 's32[2]{0}', space=sflag, size = 0x8, scoped, tag = 'scoped memory for tpu_custom_call.1']
    #allocation4 [shape = 's32[2]{0}', space=sflag, size = 0x8, scoped, tag = 'scoped memory for tpu_custom_call.1']
    #allocation5 [shape = 'u8[8192]{0}', space=vmem, size = 0x2000, scoped, tag = 'output window, operand 0']
    %6 = vsyncpa [#allocation3], 0
    %s7 = scalar_lea.sflag [#allocation3], 1
    %8 = vsyncpa %s7, 0
    %9 = vsyncpa [#allocation4], 0
    %s10 = scalar_lea.sflag [#allocation4], 1
    %11 = vsyncpa %s10, 0
    loop: start=0, step=1, limit=4
    $region2: #{tpu_custom_call.1} parent=1 // loop_pre_header
      _
    $region3: #{tpu_custom_call.1} parent=1 // loop_header
      %s13 = sphi 0, %s17
      %p14 = scmp.ge.s32.totalorder %s13, 4
      %s20 = sphi 0, %s32
      %s21 = sphi 0, %s28
      %s22 = sphi 0, %s20
      %s23 = sphi 0, %s21
      %s24 = sphi 0, %s22
      %s25 = sphi 0, %s23
      %s37 = sphi 0, %s39
      %s40 = sphi 0, %s37
      %s41 = sphi 0, %s40
      %s57 = sphi 0, %s41
      %s63 = sphi 0, %s65
      %s66 = sphi 0, %s63
      %s67 = sphi 0, %s66
      %s83 = sphi 0, %s67
    $region4: #{tpu_custom_call.1} parent=1 // loop_header_branch
      %16 = sbr.rel (%p14) target = $region8
    $region5: #{tpu_custom_call.1} parent=1 // loop_body
      %s18 = ssub.s32 %s13, 1
      %s19 = ssub.s32 %s13, 2
      %s26 = sadd.s32 1, %s21
      %p27 = scmp.ge.s32.totalorder %s26, 1
      %s28 = scalar_select %p27, 0, %s26
      %s29 = sadd.s32 1, %s20
      %s30 = scalar_select %p27, %s29, %s20
      %p31 = scmp.ge.s32.totalorder %s30, 2
      %s32 = scalar_select %p31, 0, %s30
      %s33 = ssub.s32 %s20, %s32
      %s34 = ssub.s32 %s21, %s28
      %s35 = sor.u32 %s33, %s34
      %p36 = scmp.eq.s32.totalorder %s35, 0
      %s38 = sadd.s32 %s37, 1
      %s39 = scalar_select %p36, %s37, %s38
      %p42 = pneg %p36
      %p43 = scmp.eq.s32.totalorder %s13, 1
      %p44 = por %p42, %p43
      %p45 = scmp.ne.s32.totalorder %s37, %s40
      %p46 = scmp.eq.s32.totalorder %s13, 0
      %p47 = por %p45, %p46
      %p48 = scmp.ne.s32.totalorder %s37, %s40
      %p49 = scmp.eq.s32.totalorder %s18, 1
      %p50 = por %p48, %p49
      %p51 = scmp.ne.s32.totalorder %s40, %s41
      %p52 = scmp.eq.s32.totalorder %s18, 0
      %p53 = por %p51, %p52
      %p54 = scmp.ne.s32.totalorder %s40, %s41
      %p55 = scmp.eq.s32.totalorder %s19, 1
      %p56 = por %p54, %p55
      %p58 = scmp.ne.s32.totalorder %s41, %s57
      %p59 = scmp.eq.s32.totalorder %s19, 0
      %p60 = por %p58, %p59
      %s61 = ssub.s32 %s20, %s32
      %p62 = scmp.eq.s32.totalorder %s61, 0
      %s64 = sadd.s32 %s63, 1
      %s65 = scalar_select %p62, %s63, %s64
      %p68 = pneg %p62
      %p69 = scmp.eq.s32.totalorder %s13, 1
      %p70 = por %p68, %p69
      %p71 = scmp.ne.s32.totalorder %s63, %s66
      %p72 = scmp.eq.s32.totalorder %s13, 0
      %p73 = por %p71, %p72
      %p74 = scmp.ne.s32.totalorder %s63, %s66
      %p75 = scmp.eq.s32.totalorder %s18, 1
      %p76 = por %p74, %p75
      %p77 = scmp.ne.s32.totalorder %s66, %s67
      %p78 = scmp.eq.s32.totalorder %s18, 0
      %p79 = por %p77, %p78
      %p80 = scmp.ne.s32.totalorder %s66, %s67
      %p81 = scmp.eq.s32.totalorder %s19, 1
      %p82 = por %p80, %p81
      %p84 = scmp.ne.s32.totalorder %s67, %s83
      %p85 = scmp.eq.s32.totalorder %s19, 0
      %p86 = por %p84, %p85
      %p87 = scmp.le.s32.totalorder 1, %s13
      %p88 = scmp.lt.s32.totalorder %s13, 3
      %p89 = pnand %p87, %p88
      %p90 = pneg %p89
      // Predicated region
      $region9: #{tpu_custom_call.1} parent=5 // pred_check
        _
      $region10: #{tpu_custom_call.1} parent=5 // pred_check_branch
        %92 = sbr.rel (%p89) target = $region12
      $region11: #{tpu_custom_call.1} parent=5 // pred_region
        %s93 = ssub.s32 %s13, 1
      $region12: #{tpu_custom_call.1} parent=5 // pred_fallthru
        _
      %p94 = scmp.lt.s32.totalorder %s13, 2
      // Predicated region
      $region13: #{tpu_custom_call.1} parent=5 // pred_check
        %p95 = pneg %p94
      $region14: #{tpu_custom_call.1} parent=5 // pred_check_branch
        %97 = sbr.rel (%p95) target = $region16
      $region15: #{tpu_custom_call.1} parent=5 // pred_region
        // Predicated region
        $region17: #{tpu_custom_call.1} parent=15 // pred_check
          %p98 = pneg %p47
        $region18: #{tpu_custom_call.1} parent=15 // pred_check_branch
          %100 = sbr.rel (%p98) target = $region20
        $region19: #{tpu_custom_call.1} parent=15 // pred_region
          %s101 = sand.u32 %s37, 1
          %s102 = scalar_lea.sflag [#allocation3], %s101
          %s103 = sand.u32 %s37, 1
          %s104 = smul.addr %s103, 8
          %s105 = scalar_lea.vmem [#allocation2], %s104
          %s107 = ssub.s32 128, 128
          %108 = vsyncadd %s102, %s107
          %s109 = sadd.s32 %s21, %s20
          %s110 = smul.addr %s109, 128
          %s111 = scalar_lea.hbm %s0, %s110
          %s113 = sshll.u32 %s105, 4
          %s114 = int_to_ptr.vmem [resolvable:$true] %s113
          %116 = dma.hbm_to_vmem [thread:$0]  %s111, 128, %s114, %s102
        $region20: #{tpu_custom_call.1} parent=15 // pred_fallthru
          _
      $region16: #{tpu_custom_call.1} parent=5 // pred_fallthru
        _
      %p117 = scmp.le.s32.totalorder 1, %s13
      %p118 = scmp.lt.s32.totalorder %s13, 3
      %p119 = pnand %p117, %p118
      %p120 = pneg %p119
      // Predicated region
      $region21: #{tpu_custom_call.1} parent=5 // pred_check
        _
      $region22: #{tpu_custom_call.1} parent=5 // pred_check_branch
        %122 = sbr.rel (%p119) target = $region24
      $region23: #{tpu_custom_call.1} parent=5 // pred_region
        %s123 = ssub.s32 %s13, 1
        %s124 = sand.u32 %s40, 1
        %s125 = scalar_lea.sflag [#allocation3], %s124
        %s126 = sand.u32 %s40, 1
        %s127 = smul.addr %s126, 8
        %s128 = scalar_lea.vmem [#allocation2], %s127
        // Predicated region
        $region25: #{tpu_custom_call.1} parent=23 // pred_check
          %p129 = pneg %p53
        $region26: #{tpu_custom_call.1} parent=23 // pred_check_branch
          %131 = sbr.rel (%p129) target = $region28
        $region27: #{tpu_custom_call.1} parent=23 // pred_region
          %132 = dma.done %s125, 128
        $region28: #{tpu_custom_call.1} parent=23 // pred_fallthru
          _
        %s133 = sand.u32 %s40, 1
        %s134 = scalar_lea.sflag [#allocation3], %s133
        %s135 = sand.u32 %s40, 1
        %s136 = smul.addr %s135, 8
        %s137 = scalar_lea.vmem [#allocation2], %s136
        %p138 = pneg %p53
        %p139 = pneg %p50
        %p140 = pneg %p79
        %p141 = pneg %p76
        %s142 = sand.u32 %s66, 1
        %s143 = scalar_lea.sflag [#allocation4], %s142
        %s144 = sand.u32 %s66, 1
        %s145 = smul.addr %s144, 8
        %s146 = scalar_lea.vmem [#allocation5], %s145
        %p147 = scmp.eq.s32.totalorder %s23, 0
        // Predicated region
        $region29: #{tpu_custom_call.1} parent=23 // pred_check
          %p148 = pneg %p147
        $region30: #{tpu_custom_call.1} parent=23 // pred_check_branch
          %150 = sbr.rel (%p148) target = $region32
        $region31: #{tpu_custom_call.1} parent=23 // pred_region
          %151 = vst [vmem:[%s146] sm:$0xff] 0.0
        $region32: #{tpu_custom_call.1} parent=23 // pred_fallthru
          _
        %v152 = vld [vmem:[%s128] sm:$0xff]
        %v153 = vmul.f32 %v152, %v152
        %v154 = vld [vmem:[%s146] sm:$0xff]
        %v155 = vadd.f32 %v153, 0.0
        %v156 = vadd.f32 %v154, %v155
        %157 = vst [vmem:[%s146] sm:$0xff] %v156
        %s158 = sand.u32 %s66, 1
        %s159 = scalar_lea.sflag [#allocation4], %s158
        %s160 = sand.u32 %s66, 1
        %s161 = smul.addr %s160, 8
        %s162 = scalar_lea.vmem [#allocation5], %s161
        // Predicated region
        $region33: #{tpu_custom_call.1} parent=23 // pred_check
          %p163 = pneg %p76
        $region34: #{tpu_custom_call.1} parent=23 // pred_check_branch
          %165 = sbr.rel (%p163) target = $region36
        $region35: #{tpu_custom_call.1} parent=23 // pred_region
          %s167 = ssub.s32 128, 128
          %168 = vsyncadd %s159, %s167
          %s169 = smul.addr %s22, 128
          %s170 = scalar_lea.hbm %s1, %s169
          %s172 = sshll.u32 %s162, 4
          %s173 = int_to_ptr.vmem [resolvable:$true] %s172
          %175 = dma.vmem_to_hbm [thread:$0]  %s173, 128, %s170, %s159
        $region36: #{tpu_custom_call.1} parent=23 // pred_fallthru
          _
      $region24: #{tpu_custom_call.1} parent=5 // pred_fallthru
        _
      %p176 = scmp.le.s32.totalorder 2, %s13
      // Predicated region
      $region37: #{tpu_custom_call.1} parent=5 // pred_check
        %p177 = pneg %p176
      $region38: #{tpu_custom_call.1} parent=5 // pred_check_branch
        %179 = sbr.rel (%p177) target = $region40
      $region39: #{tpu_custom_call.1} parent=5 // pred_region
        %s180 = ssub.s32 %s13, 2
        // Predicated region
        $region41: #{tpu_custom_call.1} parent=39 // pred_check
          %p181 = pneg %p82
        $region42: #{tpu_custom_call.1} parent=39 // pred_check_branch
          %183 = sbr.rel (%p181) target = $region44
        $region43: #{tpu_custom_call.1} parent=39 // pred_region
          %s184 = sand.u32 %s67, 1
          %s185 = scalar_lea.sflag [#allocation4], %s184
          %s186 = sand.u32 %s67, 1
          %s187 = smul.addr %s186, 8
          %s188 = scalar_lea.vmem [#allocation5], %s187
          %189 = dma.done %s185, 128
        $region44: #{tpu_custom_call.1} parent=39 // pred_fallthru
          _
      $region40: #{tpu_custom_call.1} parent=5 // pred_fallthru
        _
    $region6: #{tpu_custom_call.1} parent=1 // loop_footer
      %s17 = sadd.s32 1, %s13
    $region7: #{tpu_custom_call.1} parent=1 // loop_footer_branch
      %12 = sbr.rel target = $region3
    $region8: #{tpu_custom_call.1} parent=1 // loop_exit
      _
    %190 = vsyncpa [#allocation3], 1
    %s191 = scalar_lea.sflag [#allocation3], 1
    %192 = vsyncpa %s191, 1
    %193 = vsyncpa [#allocation4], 1
    %s194 = scalar_lea.sflag [#allocation4], 1
    %195 = vsyncpa %s194, 1

</llo_original>
